<compile_context>
chip_gen: v6e
topology: v6e:2x2x1
jax: 0.10.0
libtpu: 0.0.40
codegen_flags: <defaults>
</compile_context>

<pallas_src>
import functools

import jax
import jax.numpy as jnp
from jax import lax
from jax.experimental import pallas as pl
from jax.experimental.pallas import tpu as pltpu

# ----------------------------- small config --------------------------------
BATCH      = 2
NUM_FRAMES = 8          # T   (must be divisible by T_PATCH)
NUM_JOINTS = 8          # V   (must be divisible by PATCH)
DIM_IN     = 3          # C_in
DIM_FEAT   = 128        # embedding dim (multiple of 128 -> lane-dense output)
T_PATCH    = 4
PATCH      = 1

T_GRID = NUM_FRAMES // T_PATCH          # 2
V_GRID = NUM_JOINTS // PATCH            # 8
K_DIM  = DIM_IN * T_PATCH * PATCH       # flattened patch size = 12
MAX_ROW_TILE = 1024                     # ceiling when M grows large


def _choose_row_tile(m_padded: int) -> int:
    """Largest multiple-of-8 divisor of m_padded, capped at MAX_ROW_TILE.

    For the toy config (M=32) this returns 32 -> grid=(1,): a single kernel
    invocation, no megacore split, no second grid step.
    """
    cap = min(m_padded, MAX_ROW_TILE)
    best = 8
    d = 8
    while d <= cap:
        if m_padded % d == 0:
            best = d
        d += 8
    return best


# ------------------------------- kernel ------------------------------------
def skele_embed_kernel(p_ref, w_ref, b_ref, o_ref):
    # p_ref: (ROW_TILE, K_DIM)   flattened patches
    # w_ref: (K_DIM, DIM_FEAT)   conv weight flattened as (c, kt, kv) x F
    # b_ref: (1, DIM_FEAT)       conv bias
    # o_ref: (ROW_TILE, DIM_FEAT)
    acc = jnp.dot(p_ref[...], w_ref[...], preferred_element_type=jnp.float32)
    o_ref[...] = (acc + b_ref[...]).astype(o_ref.dtype)


# --------------------------- one-time param prep ----------------------------
def prepare_params(w_conv, b_conv):
    """Hoisted out of the forward path: flatten Conv2d weight (F, C, tp, p)
    into the (K, F) matmul layout matching the (c, kt, kv) patch flattening,
    and reshape the bias to a lane-dense row. Do this once at init."""
    w_flat = w_conv.reshape(DIM_FEAT, K_DIM).T      # (K, F)
    b_row = b_conv.reshape(1, DIM_FEAT)             # (1, F)
    return jnp.asarray(w_flat), jnp.asarray(b_row)


# ------------------------------- forward ------------------------------------
@functools.partial(jax.jit, static_argnames=())
def skele_embed(x, w_flat, b_row):
    """x: (N, T, V, C_in) f32.  w_flat: (K_DIM, DIM_FEAT).  b_row: (1, DIM_FEAT)."""
    N, T, V, C = x.shape
    assert T % T_PATCH == 0 and V % PATCH == 0 and C == DIM_IN
    tg, vg = T // T_PATCH, V // PATCH

    # Patch extraction (pure layout plumbing, fused under the same jit).
    # (N, T, V, C) -> (N, tg, tp, vg, p, C) -> (N, tg, vg, C, tp, p) -> (M, K)
    xp = x.reshape(N, tg, T_PATCH, vg, PATCH, C)
    xp = xp.transpose(0, 1, 3, 5, 2, 4)
    patches = xp.reshape(N * tg * vg, K_DIM)

    M = patches.shape[0]
    pad = (-M) % 8
    if pad:  # only if M is not already sublane-aligned; never taken at M=32
        patches = jnp.pad(patches, ((0, pad), (0, 0)))
    Mp = M + pad

    row_tile = _choose_row_tile(Mp)
    num_tiles = Mp // row_tile

    # Megacore split only pays off when each TC gets >= ~1K rows; below that,
    # keep the grid axis "arbitrary" (single-TC) per the perf review.
    semantics = ("parallel",) if row_tile >= 1024 and num_tiles > 1 else ("arbitrary",)

    cost = pl.CostEstimate(
        flops=2 * Mp * K_DIM * DIM_FEAT,
        transcendentals=0,
        bytes_accessed=(Mp * K_DIM + K_DIM * DIM_FEAT + DIM_FEAT + Mp * DIM_FEAT) * 4,
    )

    out = pl.pallas_call(
        skele_embed_kernel,
        out_shape=jax.ShapeDtypeStruct((Mp, DIM_FEAT), x.dtype),
        grid=(num_tiles,),
        in_specs=[
            pl.BlockSpec((row_tile, K_DIM), lambda i: (i, 0)),     # patches (tiled)
            pl.BlockSpec((K_DIM, DIM_FEAT), lambda i: (0, 0)),     # weight (resident)
            pl.BlockSpec((1, DIM_FEAT), lambda i: (0, 0)),         # bias   (resident)
        ],
        out_specs=pl.BlockSpec((row_tile, DIM_FEAT), lambda i: (i, 0)),
        compiler_params=pltpu.CompilerParams(dimension_semantics=semantics),
        cost_estimate=cost,
    )(patches, w_flat, b_row)

    if pad:
        out = out[:M]
    return out.reshape(N, tg, vg, DIM_FEAT)


# ------------------------------ reference -----------------------------------
def reference_skele_embed(x, w_conv, b_conv):
    """Pure-JAX reference matching the PyTorch forward exactly:
       einsum('ntsc->ncts') -> Conv2d(kernel=stride=[tp, p]) -> einsum('ncts->ntsc')."""
    x_ncts = jnp.einsum('ntsc->ncts', x)
    y = lax.conv_general_dilated(
        x_ncts, w_conv,
        window_strides=(T_PATCH, PATCH), padding='VALID',
        dimension_numbers=('NCHW', 'OIHW', 'NCHW'))
    y = y + b_conv[None, :, None, None]
    return jnp.einsum('ncts->ntsc', y)


if __name__ == "__main__":
    key = jax.random.PRNGKey(0)
    kx, kw, kb = jax.random.split(key, 3)
    x = jax.random.normal(kx, (BATCH, NUM_FRAMES, NUM_JOINTS, DIM_IN), jnp.float32)
    w_conv = 0.05 * jax.random.normal(kw, (DIM_FEAT, DIM_IN, T_PATCH, PATCH), jnp.float32)
    b_conv = 0.05 * jax.random.normal(kb, (DIM_FEAT,), jnp.float32)

    # One-time parameter preparation (hoisted out of the forward path).
    w_flat, b_row = prepare_params(w_conv, b_conv)

    out = skele_embed(x, w_flat, b_row)
    out = jax.block_until_ready(out)

    ref = reference_skele_embed(x, w_conv, b_conv)
    assert out.shape == (BATCH, T_GRID, V_GRID, DIM_FEAT), out.shape
    assert jnp.allclose(out, ref, atol=1e-4, rtol=1e-4), \
        f"max err {jnp.max(jnp.abs(out - ref))}"
    print("KERNEL_OK")
</pallas_src>

<mosaic_0001>
module attributes {stable_mosaic.version = 11 : i64} {
  func.func @skele_embed_kernel(%arg0: i32, %arg1: memref<32x12xf32, #tpu.memory_space<vmem>>, %arg2: memref<12x128xf32, #tpu.memory_space<vmem>>, %arg3: memref<1x128xf32, #tpu.memory_space<vmem>>, %arg4: memref<32x128xf32, #tpu.memory_space<vmem>>) attributes {dimension_semantics = [#tpu.dimension_semantics<arbitrary>], iteration_bounds = array<i64: 1>, scalar_prefetch = 0 : i64, scratch_operands = 0 : i64, tpu.core_type = #tpu.core_type<tc>, window_params = [{transform_indices = @transform_0, window_bounds = array<i64: 32, 12>}, {pipeline_mode = #tpu.pipeline_mode<synchronous>, transform_indices = @transform_1, window_bounds = array<i64: 12, 128>}, {pipeline_mode = #tpu.pipeline_mode<synchronous>, transform_indices = @transform_2, window_bounds = array<i64: 1, 128>}, {transform_indices = @transform_3, window_bounds = array<i64: 32, 128>}]} {
    %c0 = arith.constant 0 : index
    %c0_0 = arith.constant 0 : index
    %0 = vector.load %arg1[%c0, %c0_0] : memref<32x12xf32, #tpu.memory_space<vmem>>, vector<32x12xf32>
    %c0_1 = arith.constant 0 : index
    %c0_2 = arith.constant 0 : index
    %1 = vector.load %arg2[%c0_1, %c0_2] : memref<12x128xf32, #tpu.memory_space<vmem>>, vector<12x128xf32>
    %cst = arith.constant dense<0.000000e+00> : vector<32x128xf32>
    %2 = tpu.matmul %0, %1, %cst {dimension_numbers = #tpu.dot_dimension_numbers<[1], [0], [0], [1], [0, 0, 1, 1], [], []>} : vector<32x12xf32>, vector<12x128xf32>, vector<32x128xf32> -> vector<32x128xf32>
    %c0_3 = arith.constant 0 : index
    %c0_4 = arith.constant 0 : index
    %3 = vector.load %arg3[%c0_3, %c0_4] : memref<1x128xf32, #tpu.memory_space<vmem>>, vector<1x128xf32>
    %4 = vector.broadcast %3 : vector<1x128xf32> to vector<32x128xf32>
    %5 = arith.addf %2, %4 : vector<32x128xf32>
    %c0_5 = arith.constant 0 : index
    %c0_6 = arith.constant 0 : index
    %6 = vector.load %arg4[%c0_5, %c0_6] : memref<32x128xf32, #tpu.memory_space<vmem>>, vector<32x128xf32>
    tpu.vector_store %arg4[%c0_5, %c0_6], %5 {strides = array<i32>} : memref<32x128xf32, #tpu.memory_space<vmem>>, vector<32x128xf32>,
    return
  }
  func.func @transform_0(%arg0: i32) -> (i32, i32) {
    %c0_i32 = arith.constant 0 : i32
    %c0_i32_0 = arith.constant 0 : i32
    return %arg0, %c0_i32 : i32, i32
  }
  func.func @transform_1(%arg0: i32) -> (i32, i32) {
    %c0_i32 = arith.constant 0 : i32
    %c0_i32_0 = arith.constant 0 : i32
    %c0_i32_1 = arith.constant 0 : i32
    return %c0_i32, %c0_i32_0 : i32, i32
  }
  func.func @transform_2(%arg0: i32) -> (i32, i32) {
    %c0_i32 = arith.constant 0 : i32
    %c0_i32_0 = arith.constant 0 : i32
    %c0_i32_1 = arith.constant 0 : i32
    return %c0_i32, %c0_i32_0 : i32, i32
  }
  func.func @transform_3(%arg0: i32) -> (i32, i32) {
    %c0_i32 = arith.constant 0 : i32
    %c0_i32_0 = arith.constant 0 : i32
    return %arg0, %c0_i32 : i32, i32
  }
}

</mosaic_0001>

<llo_original>
// kernel: skele_embed.1
$region0: #{skele_embed.1}
  #allocation0 [shape = 'u32[]', space=smem, size = 0x4, offset = 0x4, fixed_abs, tag = 'smem constant byte address 0x4 - core index']
  #allocation1 [shape = 'u32[144,128]{1,0:T(1,128)}', space=vmem, size = 0x12000, scoped, tag = 'internal scratch']
  %s0 = inlined_call_operand.vmem [shape: f32[32,12], index: 0, kind: input, shape index: {}]
  %s1 = inlined_call_operand.vmem [shape: f32[12,128], index: 1, kind: input, shape index: {}]
  %s2 = inlined_call_operand.vmem [shape: f32[1,128], index: 2, kind: input, shape index: {}]
  %s3 = inlined_call_operand.hbm [shape: f32[32,128], index: 3, kind: output, shape index: {}]
  %s4 = sld [smem:[#allocation0]]
  $region22: #{skele_embed.1} parent=0
    _
  %s6 = ssub.s32 1, %s4
  %s7 = scalar_select 0, %s6, %s4
  $region1: #{skele_embed.1} parent=0
    #allocation2 [shape = 'u8[16384]{0}', space=vmem, size = 0x4000, scoped, tag = 'output window, operand 0, single buffered']
    #allocation3 [shape = 's32[1]{0}', space=sflag, size = 0x4, scoped, tag = 'scoped memory for skele_embed.1']
    %8 = vsyncpa [#allocation3], 0
    // Predicated region
    $region2: #{skele_embed.1} parent=1 // pred_check
      _
    $region3: #{skele_embed.1} parent=1 // pred_check_branch
      %10 = sbr.rel (0) target = $region5
    $region4: #{skele_embed.1} parent=1 // pred_region
      _
    $region5: #{skele_embed.1} parent=1 // pred_fallthru
      _
    // Predicated region
    $region6: #{skele_embed.1} parent=1 // pred_check
      _
    $region7: #{skele_embed.1} parent=1 // pred_check_branch
      %12 = sbr.rel (0) target = $region9
    $region8: #{skele_embed.1} parent=1 // pred_region
      _
    $region9: #{skele_embed.1} parent=1 // pred_fallthru
      _
    // Predicated region
    $region10: #{skele_embed.1} parent=1 // pred_check
      _
    $region11: #{skele_embed.1} parent=1 // pred_check_branch
      %14 = sbr.rel (0) target = $region13
    $region12: #{skele_embed.1} parent=1 // pred_region
      _
    $region13: #{skele_embed.1} parent=1 // pred_fallthru
      _
    %v15 = vld [vmem:[%s0] sm:$0xff]
    %v16 = vld [vmem:[%s0 + $0x8] sm:$0xff]
    %v17 = vld [vmem:[%s0 + $0x10] sm:$0xff]
    %v18 = vld [vmem:[%s0 + $0x18] sm:$0xff]
    %v19 = vld [vmem:[%s1] sm:$0xff]
    %v20 = vld [vmem:[%s1 + $0x8] sm:$0xf]
    %v21 = vld [vmem:[%s2] sm:$0x1]
    %v23 = vlaneseq
    %v24 = vshrl.u32 %v23, 7
    %v25 = vsub.s32 0, %v24
    %v26 = vrot.slane %v21, %v25
    %vm28 = vcmask 97280
    %v30 = vsel %vm28, %v15, 0
    %v33 = vsel %vm28, %v16, 0
    %v36 = vsel %vm28, %v17, 0
    %v39 = vsel %vm28, %v18, 0
    %vm41 = vcmask 1043456
    %v43 = vsel %vm41, %v20, 0
    %45 = vmatprep.subr.mxu0 0.0
    %46 = vmatpush1.msra.mxu0 0.0
    %47 = vmatprep.subr.mxu0 0.0
    %48 = vmatpush1.msra.mxu0 0.0
    %49 = vmatprep.subr.mxu0 0.0
    %50 = vmatpush1.msra.mxu0 0.0
    %51 = vmatprep.subr.mxu0 0.0
    %52 = vmatpush1.msra.mxu0 0.0
    %53 = vmatprep.subr.mxu0 0.0
    %54 = vmatpush1.msra.mxu0 0.0
    %55 = vmatprep.subr.mxu0 0.0
    %56 = vmatpush1.msra.mxu0 0.0
    %57 = vmatprep.subr.mxu0 0.0
    %58 = vmatpush1.msra.mxu0 0.0
    %59 = vmatprep.subr.mxu0 0.0
    %60 = vmatpush1.msra.mxu0 0.0
    %61 = vmatprep.subr.mxu0 0.0
    %62 = vmatpush1.msra.mxu0 0.0
    %63 = vmatprep.subr.mxu0 0.0
    %64 = vmatpush1.msra.mxu0 0.0
    %65 = vmatprep.subr.mxu0 0.0
    %66 = vmatpush1.msra.mxu0 0.0
    %67 = vmatprep.subr.mxu0 0.0
    %68 = vmatpush1.msra.mxu0 0.0
    %69 = vmatprep.subr.mxu0 0.0
    %70 = vmatpush1.msra.mxu0 0.0
    %71 = vmatprep.subr.mxu0 0.0
    %72 = vmatpush1.msra.mxu0 0.0
    %73 = vmatprep.subr.mxu0 0.0
    %74 = vmatpush1.msra.mxu0 %v43
    %75 = vmatprep.subr.mxu0 0.0
    %76 = vmatpush1.msra.mxu0 %v19
    %77 = vmatprep.subr.mxu0 0.0
    %78 = vmatpush2.msra.mxu0 0.0
    %79 = vmatprep.subr.mxu0 0.0
    %80 = vmatpush2.msra.mxu0 0.0
    %81 = vmatprep.subr.mxu0 0.0
    %82 = vmatpush2.msra.mxu0 0.0
    %83 = vmatprep.subr.mxu0 0.0
    %84 = vmatpush2.msra.mxu0 0.0
    %85 = vmatprep.subr.mxu0 0.0
    %86 = vmatpush2.msra.mxu0 0.0
    %87 = vmatprep.subr.mxu0 0.0
    %88 = vmatpush2.msra.mxu0 0.0
    %89 = vmatprep.subr.mxu0 0.0
    %90 = vmatpush2.msra.mxu0 0.0
    %91 = vmatprep.subr.mxu0 0.0
    %92 = vmatpush2.msra.mxu0 0.0
    %93 = vmatprep.subr.mxu0 0.0
    %94 = vmatpush2.msra.mxu0 0.0
    %95 = vmatprep.subr.mxu0 0.0
    %96 = vmatpush2.msra.mxu0 0.0
    %97 = vmatprep.subr.mxu0 0.0
    %98 = vmatpush2.msra.mxu0 0.0
    %99 = vmatprep.subr.mxu0 0.0
    %100 = vmatpush2.msra.mxu0 0.0
    %101 = vmatprep.subr.mxu0 0.0
    %102 = vmatpush2.msra.mxu0 0.0
    %103 = vmatprep.subr.mxu0 0.0
    %104 = vmatpush2.msra.mxu0 0.0
    %105 = vmatprep.subr.mxu0 0.0
    %106 = vmatpush2.msra.mxu0 0.0
    %107 = vmatprep.subr.mxu0 0.0
    %108 = vmatpush2.msra.mxu0 0.0
    %109 = vmatprep.mubr.f32.mxu0 0.0
    %110 = vmatmul.mubr.f32.gmra.mxu0 %v30
    %v111 = vpop.f32.mrf.mxu0
    %v112 = vadd.f32 %v26, %v111
    %v113 = vpop.f32.mrf.mxu0
    %114 = vmatprep.mubr.f32.mxu0 0.0
    %115 = vmatmul.mubr.f32.gmra.mxu0 %v33
    %v116 = vpop.f32.mrf.mxu0
    %v117 = vadd.f32 %v26, %v116
    %v118 = vpop.f32.mrf.mxu0
    %119 = vmatprep.mubr.f32.mxu0 0.0
    %120 = vmatmul.mubr.f32.gmra.mxu0 %v36
    %v121 = vpop.f32.mrf.mxu0
    %v122 = vadd.f32 %v26, %v121
    %v123 = vpop.f32.mrf.mxu0
    %124 = vmatprep.mubr.f32.mxu0 0.0
    %125 = vmatmul.mubr.f32.gmra.mxu0 %v39
    %v126 = vpop.f32.mrf.mxu0
    %v127 = vadd.f32 %v26, %v126
    %v128 = vpop.f32.mrf.mxu0
    %129 = vdwg.mxu0
    %130 = vst [vmem:[#allocation2] sm:$0xff] %v112
    %131 = vst [vmem:[#allocation2 + $0x8] sm:$0xff] %v117
    %132 = vst [vmem:[#allocation2 + $0x10] sm:$0xff] %v122
    %133 = vst [vmem:[#allocation2 + $0x18] sm:$0xff] %v127
    // Predicated region
    $region14: #{skele_embed.1} parent=1 // pred_check
      _
    $region15: #{skele_embed.1} parent=1 // pred_check_branch
      %135 = sbr.rel (0) target = $region17
    $region16: #{skele_embed.1} parent=1 // pred_region
      %s137 = ssub.s32 512, 512
      %138 = vsyncadd [#allocation3], %s137
      %s139 = sshll.u32 [#allocation2], 4
      %s140 = int_to_ptr.vmem [resolvable:$true] %s139
      %145 = dma.vmem_to_hbm [thread:$0]  %s140, 512, %s3, [#allocation3], 128, 128, 8
    $region17: #{skele_embed.1} parent=1 // pred_fallthru
      _
    // Predicated region
    $region18: #{skele_embed.1} parent=1 // pred_check
      _
    $region19: #{skele_embed.1} parent=1 // pred_check_branch
      %147 = sbr.rel (0) target = $region21
    $region20: #{skele_embed.1} parent=1 // pred_region
      %148 = dma.done [#allocation3], 512
    $region21: #{skele_embed.1} parent=1 // pred_fallthru
      _
    %149 = vsyncpa [#allocation3], 1

</llo_original>
